<compile_context>
chip_gen: v7x
topology: tpu7x:2x2x1
jax: 0.10.0
libtpu: 0.0.40
codegen_flags: <defaults>
</compile_context>

<pallas_src>
import jax
import jax.numpy as jnp
from jax.experimental import pallas as pl
from jax.experimental.pallas import tpu as pltpu

EPS = 1e-6


# --------------------------------------------------------------------------- #
# Fused one-pass kernel: whole (Bt, C, HW) sample block resident in VMEM.
# --------------------------------------------------------------------------- #
def _adalin_fused_kernel(rho_ref, x_ref, gamma_ref, beta_ref, o_ref):
    # x_ref:     (Bt, C, HW)  VMEM (input dtype, f32 or bf16)
    # gamma_ref: (Bt, C, 1)   VMEM f32 (pre-shaped in wrapper -> no in-kernel relayout)
    # beta_ref:  (Bt, C, 1)   VMEM f32
    # rho_ref:   (1, 1)       SMEM f32 (already `(rho-0.1).clamp(0,1)`-ed)
    x = x_ref[...].astype(jnp.float32)                 # stats math always in f32
    bt, c, hw = x.shape
    n_ins = jnp.float32(hw)
    n_ln = jnp.float32(c * hw)
    rho = rho_ref[0, 0]

    # One pass: per-channel sum and sum-of-squares (no centered full-block temp).
    # css = sumsq - sum^2/n, clamped >= 0 against f32 cancellation.
    s = jnp.sum(x, axis=-1, keepdims=True)             # (Bt, C, 1)
    sq = jnp.sum(x * x, axis=-1, keepdims=True)        # (Bt, C, 1)

    ins_mean = s / n_ins
    ins_css = jnp.maximum(sq - s * ins_mean, 0.0)
    inv_ins = jax.lax.rsqrt(ins_css / (n_ins - 1.0) + EPS)   # torch .var() is unbiased

    # Layer-norm stats from the same partials -- x is reduced only once.
    ln_s = jnp.sum(s, axis=1, keepdims=True)           # (Bt, 1, 1)
    ln_sq = jnp.sum(sq, axis=1, keepdims=True)
    ln_mean = ln_s / n_ln
    ln_css = jnp.maximum(ln_sq - ln_s * ln_mean, 0.0)
    inv_ln = jax.lax.rsqrt(ln_css / (n_ln - 1.0) + EPS)

    # rho blend + affine folded into one per-channel FMA: out = x*scale + shift.
    gamma = gamma_ref[...]
    beta = beta_ref[...]
    blend_inv = rho * inv_ins + (1.0 - rho) * inv_ln                      # (Bt, C, 1)
    blend_mu = rho * ins_mean * inv_ins + (1.0 - rho) * ln_mean * inv_ln  # (Bt, C, 1)
    scale = gamma * blend_inv
    shift = beta - gamma * blend_mu
    o_ref[...] = (x * scale + shift).astype(o_ref.dtype)


# --------------------------------------------------------------------------- #
# Split path (samples too big for one block): stats pass + apply pass.
# --------------------------------------------------------------------------- #
def _adalin_stats_kernel(x_ref, s_ref, q_ref, acc_s, acc_q):
    h = pl.program_id(1)

    @pl.when(h == 0)
    def _():
        acc_s[...] = jnp.zeros_like(acc_s)
        acc_q[...] = jnp.zeros_like(acc_q)

    x = x_ref[...].astype(jnp.float32)                 # (1, C, hw_chunk)
    acc_s[...] += jnp.sum(x, axis=-1, keepdims=True)
    acc_q[...] += jnp.sum(x * x, axis=-1, keepdims=True)

    @pl.when(h == pl.num_programs(1) - 1)
    def _():
        s_ref[...] = acc_s[...]
        q_ref[...] = acc_q[...]


def _adalin_apply_kernel(scale_ref, shift_ref, x_ref, o_ref):
    x = x_ref[...].astype(jnp.float32)
    o_ref[...] = (x * scale_ref[...] + shift_ref[...]).astype(o_ref.dtype)


# --------------------------------------------------------------------------- #
# Block-size policies.
# --------------------------------------------------------------------------- #
def _pick_bt(batch, sample_bytes, target_bytes, max_bytes):
    """Smallest divisor of `batch` whose block reaches ~target_bytes, while
    keeping >= 2 grid steps (DMA/compute overlap + v7x megacore) and staying
    under max_bytes.  Defaults to Bt=1 (never collapses the grid to 1 step
    unless batch == 1)."""
    bt = 1
    for cand in range(1, batch + 1):
        if batch % cand:
            continue
        blk = cand * sample_bytes
        steps = batch // cand
        if cand > 1 and (blk > max_bytes or (batch >= 2 and steps < 2)):
            break
        bt = cand
        if blk >= target_bytes:
            break
    return bt


def _pick_hw_chunk(hw, c, max_bytes):
    """Largest multiple-of-128 divisor of HW whose (C, chunk) f32 block fits."""
    budget = max_bytes // (c * 4)
    best = None
    for d in range(128, hw + 1, 128):
        if hw % d == 0 and d <= budget:
            best = d
    return best


def _vmem_limit(block_io_bytes, block_f32_bytes):
    # double-buffered x + out blocks plus in-kernel f32 temps, with headroom;
    # capped so it is valid even on v7x's 64 MiB parts.
    needed = 4 * block_io_bytes + 3 * block_f32_bytes + (2 << 20)
    return int(min(64 << 20, max(32 << 20, needed)))


# --------------------------------------------------------------------------- #
# Wrappers.
# --------------------------------------------------------------------------- #
def _adalin_fused(x_l, gamma, beta, rho_c, target_block_bytes, max_block_bytes):
    B, C, HW = x_l.shape
    itemsize = x_l.dtype.itemsize
    sample_bytes = C * HW * max(itemsize, 4)        # size conservatively in f32
    Bt = _pick_bt(B, sample_bytes, target_block_bytes, max_block_bytes)

    n_elem = B * C * HW
    cost = pl.CostEstimate(
        flops=6 * n_elem,
        transcendentals=2 * B * C,
        bytes_accessed=2 * n_elem * itemsize + 3 * B * C * 4,
    )

    return pl.pallas_call(
        _adalin_fused_kernel,
        out_shape=jax.ShapeDtypeStruct((B, C, HW), x_l.dtype),
        grid=(B // Bt,),
        in_specs=[
            pl.BlockSpec(memory_space=pltpu.MemorySpace.SMEM),      # rho scalar
            pl.BlockSpec((Bt, C, HW), lambda b: (b, 0, 0)),         # x
            pl.BlockSpec((Bt, C, 1), lambda b: (b, 0, 0)),          # gamma (pre-shaped)
            pl.BlockSpec((Bt, C, 1), lambda b: (b, 0, 0)),          # beta  (pre-shaped)
        ],
        out_specs=pl.BlockSpec((Bt, C, HW), lambda b: (b, 0, 0)),
        compiler_params=pltpu.CompilerParams(
            dimension_semantics=("parallel",),       # shards batch across TCs on v7x
            vmem_limit_bytes=_vmem_limit(Bt * C * HW * itemsize, Bt * C * HW * 4),
        ),
        cost_estimate=cost,
    )(rho_c, x_l, gamma, beta)


def _adalin_split(x_l, gamma, beta, rho_c, hw_chunk):
    B, C, HW = x_l.shape
    itemsize = x_l.dtype.itemsize
    n_hw = HW // hw_chunk
    n_elem = B * C * HW
    vmem = _vmem_limit(C * hw_chunk * itemsize, C * hw_chunk * 4)

    # Pass 1: per-(b, c) sum / sum-of-squares accumulated over HW chunks.
    s, q = pl.pallas_call(
        _adalin_stats_kernel,
        out_shape=(jax.ShapeDtypeStruct((B, C, 1), jnp.float32),
                   jax.ShapeDtypeStruct((B, C, 1), jnp.float32)),
        grid=(B, n_hw),
        in_specs=[pl.BlockSpec((1, C, hw_chunk), lambda b, h: (b, 0, h))],
        out_specs=(pl.BlockSpec((1, C, 1), lambda b, h: (b, 0, 0)),
                   pl.BlockSpec((1, C, 1), lambda b, h: (b, 0, 0))),
        scratch_shapes=[pltpu.VMEM((1, C, 1), jnp.float32),
                        pltpu.VMEM((1, C, 1), jnp.float32)],
        compiler_params=pltpu.CompilerParams(
            dimension_semantics=("parallel", "arbitrary"),
            vmem_limit_bytes=vmem,
        ),
        cost_estimate=pl.CostEstimate(
            flops=3 * n_elem, transcendentals=0,
            bytes_accessed=n_elem * itemsize + 2 * B * C * 4),
    )(x_l)

    # Tiny (B*C) stats combine + affine fold in plain XLA.
    n_ins = jnp.float32(HW)
    n_ln = jnp.float32(C * HW)
    rho = rho_c[0, 0]
    ins_mean = s / n_ins
    ins_css = jnp.maximum(q - s * ins_mean, 0.0)
    inv_ins = jax.lax.rsqrt(ins_css / (n_ins - 1.0) + EPS)
    ln_s = jnp.sum(s, axis=1, keepdims=True)
    ln_q = jnp.sum(q, axis=1, keepdims=True)
    ln_mean = ln_s / n_ln
    ln_css = jnp.maximum(ln_q - ln_s * ln_mean, 0.0)
    inv_ln = jax.lax.rsqrt(ln_css / (n_ln - 1.0) + EPS)
    blend_inv = rho * inv_ins + (1.0 - rho) * inv_ln
    blend_mu = rho * ins_mean * inv_ins + (1.0 - rho) * ln_mean * inv_ln
    scale = gamma * blend_inv                       # (B, C, 1) f32
    shift = beta - gamma * blend_mu                 # (B, C, 1) f32

    # Pass 2: fused per-channel FMA, fully parallel over (sample, HW chunk).
    return pl.pallas_call(
        _adalin_apply_kernel,
        out_shape=jax.ShapeDtypeStruct((B, C, HW), x_l.dtype),
        grid=(B, n_hw),
        in_specs=[
            pl.BlockSpec((1, C, 1), lambda b, h: (b, 0, 0)),         # scale
            pl.BlockSpec((1, C, 1), lambda b, h: (b, 0, 0)),         # shift
            pl.BlockSpec((1, C, hw_chunk), lambda b, h: (b, 0, h)),  # x
        ],
        out_specs=pl.BlockSpec((1, C, hw_chunk), lambda b, h: (b, 0, h)),
        compiler_params=pltpu.CompilerParams(
            dimension_semantics=("parallel", "parallel"),
            vmem_limit_bytes=vmem,
        ),
        cost_estimate=pl.CostEstimate(
            flops=2 * n_elem, transcendentals=0,
            bytes_accessed=2 * n_elem * itemsize + 2 * B * C * 4),
    )(scale, shift, x_l)


def adalin_pallas(x, z, w_gamma, b_gamma, w_beta, b_beta, rho,
                  *, target_block_bytes=1 << 20, max_block_bytes=4 << 20):
    """AdaLIN forward.  x: (B, C, H, W) f32/bf16 NCHW (like PyTorch); z: (B, Z), Z == C.
    bf16 I/O is supported (halves HBM traffic); stats math stays f32 in-kernel."""
    B, C, H, W = x.shape
    HW = H * W
    assert z.shape[1] == C, "AdaLIN needs z_dim == channels (gamma/beta view(b,c,1,1))"

    x_l = x.reshape(B, C, HW)                       # pure reshape, no transpose

    # Both tiny Linear layers fused into one XLA matmul (reads z once).
    w_gb = jnp.concatenate([w_gamma, w_beta], axis=0).astype(jnp.float32)   # (2C, C)
    b_gb = jnp.concatenate([b_gamma, b_beta], axis=0).astype(jnp.float32)   # (2C,)
    gb = z.astype(jnp.float32) @ w_gb.T + b_gb                              # (B, 2C)
    gamma = gb[:, :C].reshape(B, C, 1)
    beta = gb[:, C:].reshape(B, C, 1)

    # rho is a learned scalar: (rho - 0.1).clamp(0, 1), matching the module.
    rho_c = jnp.clip(jnp.asarray(rho, jnp.float32).reshape(1, 1) - 0.1, 0.0, 1.0)

    sample_f32_bytes = C * HW * 4
    if sample_f32_bytes > max_block_bytes:
        hw_chunk = _pick_hw_chunk(HW, C, max_block_bytes)
        if hw_chunk is not None:
            return _adalin_split(x_l, gamma, beta, rho_c, hw_chunk).reshape(B, C, H, W)
        # TODO(synk): samples whose HW has no suitable multiple-of-128 divisor
        # need a C-chunked stats pass; fall through to a single big block.

    out = _adalin_fused(x_l, gamma, beta, rho_c, target_block_bytes, max_block_bytes)
    return out.reshape(B, C, H, W)


# --------------------------------------------------------------------------- #
# Pure-JAX reference (mirrors the PyTorch AdaLIN forward, unbiased variance).
# --------------------------------------------------------------------------- #
def adalin_reference(x, z, w_gamma, b_gamma, w_beta, b_beta, rho):
    b, c, h, w = x.shape
    xf = x.reshape(b, c, -1)
    ins_mean = xf.mean(axis=2).reshape(b, c, 1, 1)
    ins_std = jnp.sqrt(xf.var(axis=2, ddof=1) + EPS).reshape(b, c, 1, 1)
    x_ins = (x - ins_mean) / ins_std
    xl = x.reshape(b, -1)
    ln_mean = xl.mean(axis=1).reshape(b, 1, 1, 1)
    ln_std = jnp.sqrt(xl.var(axis=1, ddof=1).reshape(b, 1, 1, 1) + EPS)
    x_ln = (x - ln_mean) / ln_std
    r = jnp.clip(rho - 0.1, 0.0, 1.0)
    x_hat = r * x_ins + (1.0 - r) * x_ln
    gamma = (z @ w_gamma.T + b_gamma).reshape(b, c, 1, 1)
    beta = (z @ w_beta.T + b_beta).reshape(b, c, 1, 1)
    return x_hat * gamma + beta


if __name__ == "__main__":
    B, C, H, W = 2, 4, 16, 16
    Z = C  # z_dim must equal the channel count (gamma/beta .view(b, c, 1, 1))

    key = jax.random.PRNGKey(0)
    kx, kz, kwg, kbg, kwb, kbb = jax.random.split(key, 6)

    x = jax.random.normal(kx, (B, C, H, W), dtype=jnp.float32)
    z = jax.random.normal(kz, (B, Z), dtype=jnp.float32)

    bound = 1.0 / jnp.sqrt(jnp.float32(Z))
    w_gamma = jax.random.uniform(kwg, (Z, Z), jnp.float32, -bound, bound)
    b_gamma = jax.random.uniform(kbg, (Z,), jnp.float32, -bound, bound)
    w_beta = jax.random.uniform(kwb, (Z, Z), jnp.float32, -bound, bound)
    b_beta = jax.random.uniform(kbb, (Z,), jnp.float32, -bound, bound)
    rho = jnp.float32(1.0)  # nn.Parameter(FloatTensor(1).fill_(1.0))

    ref = adalin_reference(x, z, w_gamma, b_gamma, w_beta, b_beta, rho)

    # 1) fused one-pass path (default block policy -> grid of B steps here).
    out = jax.block_until_ready(adalin_pallas(x, z, w_gamma, b_gamma, w_beta, b_beta, rho))
    assert out.shape == (B, C, H, W)
    assert jnp.allclose(out, ref, rtol=1e-4, atol=1e-4), (
        f"fused path max abs err {jnp.max(jnp.abs(out - ref))}")

    # 2) split (two-pass) path, forced by a tiny per-block budget.
    out_split = jax.block_until_ready(
        adalin_pallas(x, z, w_gamma, b_gamma, w_beta, b_beta, rho, max_block_bytes=2048))
    assert jnp.allclose(out_split, ref, rtol=1e-4, atol=1e-4), (
        f"split path max abs err {jnp.max(jnp.abs(out_split - ref))}")

    # 3) bf16 I/O through the fused path (stats math stays f32 in-kernel).
    xb = x.astype(jnp.bfloat16)
    out_bf16 = jax.block_until_ready(
        adalin_pallas(xb, z, w_gamma, b_gamma, w_beta, b_beta, rho))
    ref_b = adalin_reference(xb.astype(jnp.float32), z, w_gamma, b_gamma, w_beta, b_beta, rho)
    assert out_bf16.dtype == jnp.bfloat16
    assert jnp.allclose(out_bf16.astype(jnp.float32), ref_b, rtol=5e-2, atol=5e-2), (
        f"bf16 path max abs err {jnp.max(jnp.abs(out_bf16.astype(jnp.float32) - ref_b))}")

    print("KERNEL_OK")
</pallas_src>

<mosaic_0001>
module attributes {stable_mosaic.version = 11 : i64} {
  func.func @_adalin_fused_kernel(%arg0: i32, %arg1: memref<1x1xf32, #tpu.memory_space<smem>>, %arg2: memref<1x4x256xf32, #tpu.memory_space<vmem>>, %arg3: memref<1x4x1xf32, #tpu.memory_space<vmem>>, %arg4: memref<1x4x1xf32, #tpu.memory_space<vmem>>, %arg5: memref<1x4x256xf32, #tpu.memory_space<vmem>>) attributes {dimension_semantics = [#tpu.dimension_semantics<parallel>], iteration_bounds = array<i64: 2>, scalar_prefetch = 0 : i64, scratch_operands = 0 : i64, tpu.core_type = #tpu.core_type<tc>, window_params = [{transform_indices = @transform_0, window_bounds = array<i64: 1, 1>}, {transform_indices = @transform_1, window_bounds = array<i64: 1, 4, 256>}, {transform_indices = @transform_2, window_bounds = array<i64: 1, 4, 1>}, {transform_indices = @transform_3, window_bounds = array<i64: 1, 4, 1>}, {transform_indices = @transform_4, window_bounds = array<i64: 1, 4, 256>}]} {
    %c0 = arith.constant 0 : index
    %c0_0 = arith.constant 0 : index
    %c0_1 = arith.constant 0 : index
    %0 = vector.load %arg2[%c0, %c0_0, %c0_1] : memref<1x4x256xf32, #tpu.memory_space<vmem>>, vector<1x4x256xf32>
    %c0_2 = arith.constant 0 : index
    %c0_3 = arith.constant 0 : index
    %1 = memref.load %arg1[%c0_2, %c0_3] : memref<1x1xf32, #tpu.memory_space<smem>>
    %cst = arith.constant dense<0.000000e+00> : vector<1x4xf32>
    %2 = vector.multi_reduction <add>, %0, %cst [2] : vector<1x4x256xf32> to vector<1x4xf32>
    %3 = vector.shape_cast %2 : vector<1x4xf32> to vector<1x4x1xf32>
    %4 = arith.mulf %0, %0 : vector<1x4x256xf32>
    %cst_4 = arith.constant dense<0.000000e+00> : vector<1x4xf32>
    %5 = vector.multi_reduction <add>, %4, %cst_4 [2] : vector<1x4x256xf32> to vector<1x4xf32>
    %6 = vector.shape_cast %5 : vector<1x4xf32> to vector<1x4x1xf32>
    %cst_5 = arith.constant 2.560000e+02 : f32
    %7 = vector.broadcast %cst_5 : f32 to vector<1x4x1xf32>
    %8 = arith.divf %3, %7 : vector<1x4x1xf32>
    %9 = arith.mulf %3, %8 : vector<1x4x1xf32>
    %10 = arith.subf %6, %9 : vector<1x4x1xf32>
    %cst_6 = arith.constant 0.000000e+00 : f32
    %11 = vector.broadcast %cst_6 : f32 to vector<1x4x1xf32>
    %12 = arith.maximumf %10, %11 : vector<1x4x1xf32>
    %cst_7 = arith.constant 2.560000e+02 : f32
    %cst_8 = arith.constant 1.000000e+00 : f32
    %13 = arith.subf %cst_7, %cst_8 : f32
    %14 = vector.broadcast %13 : f32 to vector<1x4x1xf32>
    %15 = arith.divf %12, %14 : vector<1x4x1xf32>
    %cst_9 = arith.constant 9.99999997E-7 : f32
    %16 = vector.broadcast %cst_9 : f32 to vector<1x4x1xf32>
    %17 = arith.addf %15, %16 : vector<1x4x1xf32>
    %18 = math.rsqrt %17 : vector<1x4x1xf32>
    %cst_10 = arith.constant dense<0.000000e+00> : vector<1x1xf32>
    %19 = vector.multi_reduction <add>, %3, %cst_10 [1] : vector<1x4x1xf32> to vector<1x1xf32>
    %20 = vector.shape_cast %19 : vector<1x1xf32> to vector<1x1x1xf32>
    %cst_11 = arith.constant dense<0.000000e+00> : vector<1x1xf32>
    %21 = vector.multi_reduction <add>, %6, %cst_11 [1] : vector<1x4x1xf32> to vector<1x1xf32>
    %22 = vector.shape_cast %21 : vector<1x1xf32> to vector<1x1x1xf32>
    %cst_12 = arith.constant 1.024000e+03 : f32
    %23 = vector.broadcast %cst_12 : f32 to vector<1x1x1xf32>
    %24 = arith.divf %20, %23 : vector<1x1x1xf32>
    %25 = arith.mulf %20, %24 : vector<1x1x1xf32>
    %26 = arith.subf %22, %25 : vector<1x1x1xf32>
    %cst_13 = arith.constant 0.000000e+00 : f32
    %27 = vector.broadcast %cst_13 : f32 to vector<1x1x1xf32>
    %28 = arith.maximumf %26, %27 : vector<1x1x1xf32>
    %cst_14 = arith.constant 1.024000e+03 : f32
    %cst_15 = arith.constant 1.000000e+00 : f32
    %29 = arith.subf %cst_14, %cst_15 : f32
    %30 = vector.broadcast %29 : f32 to vector<1x1x1xf32>
    %31 = arith.divf %28, %30 : vector<1x1x1xf32>
    %cst_16 = arith.constant 9.99999997E-7 : f32
    %32 = vector.broadcast %cst_16 : f32 to vector<1x1x1xf32>
    %33 = arith.addf %31, %32 : vector<1x1x1xf32>
    %34 = math.rsqrt %33 : vector<1x1x1xf32>
    %c0_17 = arith.constant 0 : index
    %c0_18 = arith.constant 0 : index
    %c0_19 = arith.constant 0 : index
    %35 = vector.load %arg3[%c0_17, %c0_18, %c0_19] : memref<1x4x1xf32, #tpu.memory_space<vmem>>, vector<1x4x1xf32>
    %c0_20 = arith.constant 0 : index
    %c0_21 = arith.constant 0 : index
    %c0_22 = arith.constant 0 : index
    %36 = vector.load %arg4[%c0_20, %c0_21, %c0_22] : memref<1x4x1xf32, #tpu.memory_space<vmem>>, vector<1x4x1xf32>
    %37 = vector.broadcast %1 : f32 to vector<1x4x1xf32>
    %38 = arith.mulf %37, %18 : vector<1x4x1xf32>
    %cst_23 = arith.constant 1.000000e+00 : f32
    %39 = arith.subf %cst_23, %1 : f32
    %40 = vector.broadcast %39 : f32 to vector<1x1x1xf32>
    %41 = arith.mulf %40, %34 : vector<1x1x1xf32>
    %42 = vector.broadcast %41 : vector<1x1x1xf32> to vector<1x4x1xf32>
    %43 = arith.addf %38, %42 : vector<1x4x1xf32>
    %44 = vector.broadcast %1 : f32 to vector<1x4x1xf32>
    %45 = arith.mulf %44, %8 : vector<1x4x1xf32>
    %46 = arith.mulf %45, %18 : vector<1x4x1xf32>
    %cst_24 = arith.constant 1.000000e+00 : f32
    %47 = arith.subf %cst_24, %1 : f32
    %48 = vector.broadcast %47 : f32 to vector<1x1x1xf32>
    %49 = arith.mulf %48, %24 : vector<1x1x1xf32>
    %50 = arith.mulf %49, %34 : vector<1x1x1xf32>
    %51 = vector.broadcast %50 : vector<1x1x1xf32> to vector<1x4x1xf32>
    %52 = arith.addf %46, %51 : vector<1x4x1xf32>
    %53 = arith.mulf %35, %43 : vector<1x4x1xf32>
    %54 = arith.mulf %35, %52 : vector<1x4x1xf32>
    %55 = arith.subf %36, %54 : vector<1x4x1xf32>
    %56 = vector.broadcast %53 : vector<1x4x1xf32> to vector<1x4x256xf32>
    %57 = arith.mulf %0, %56 : vector<1x4x256xf32>
    %58 = vector.broadcast %55 : vector<1x4x1xf32> to vector<1x4x256xf32>
    %59 = arith.addf %57, %58 : vector<1x4x256xf32>
    %c0_25 = arith.constant 0 : index
    %c0_26 = arith.constant 0 : index
    %c0_27 = arith.constant 0 : index
    %60 = vector.load %arg5[%c0_25, %c0_26, %c0_27] : memref<1x4x256xf32, #tpu.memory_space<vmem>>, vector<1x4x256xf32>
    tpu.vector_store %arg5[%c0_25, %c0_26, %c0_27], %59 {strides = array<i32>} : memref<1x4x256xf32, #tpu.memory_space<vmem>>, vector<1x4x256xf32>,
    return
  }
  func.func @transform_0(%arg0: i32) -> (i32, i32) {
    %c0_i32 = arith.constant 0 : i32
    %c0_i32_0 = arith.constant 0 : i32
    %c0_i32_1 = arith.constant 0 : i32
    return %c0_i32, %c0_i32_0 : i32, i32
  }
  func.func @transform_1(%arg0: i32) -> (i32, i32, i32) {
    %c0_i32 = arith.constant 0 : i32
    %c0_i32_0 = arith.constant 0 : i32
    %c0_i32_1 = arith.constant 0 : i32
    return %arg0, %c0_i32, %c0_i32_0 : i32, i32, i32
  }
  func.func @transform_2(%arg0: i32) -> (i32, i32, i32) {
    %c0_i32 = arith.constant 0 : i32
    %c0_i32_0 = arith.constant 0 : i32
    %c0_i32_1 = arith.constant 0 : i32
    return %arg0, %c0_i32, %c0_i32_0 : i32, i32, i32
  }
  func.func @transform_3(%arg0: i32) -> (i32, i32, i32) {
    %c0_i32 = arith.constant 0 : i32
    %c0_i32_0 = arith.constant 0 : i32
    %c0_i32_1 = arith.constant 0 : i32
    return %arg0, %c0_i32, %c0_i32_0 : i32, i32, i32
  }
  func.func @transform_4(%arg0: i32) -> (i32, i32, i32) {
    %c0_i32 = arith.constant 0 : i32
    %c0_i32_0 = arith.constant 0 : i32
    %c0_i32_1 = arith.constant 0 : i32
    return %arg0, %c0_i32, %c0_i32_0 : i32, i32, i32
  }
}

</mosaic_0001>

<llo_original>
// kernel: tpu_custom_call.1
$region0: #{tpu_custom_call.1}
  #allocation0 [shape = 'u32[]', space=smem, size = 0x4, offset = 0x4, fixed_abs, tag = 'smem constant byte address 0x4 - core index']
  #allocation1 [shape = 'u32[144,128]{1,0:T(1,128)}', space=vmem, size = 0x12000, scoped, tag = 'internal scratch']
  #allocation2 [shape = 'f32[1,1]{1,0:T(1,128)S(6)}', space=smem, size = 0x200, scoped, tag = 'scoped memory for tpu_custom_call.1']
  %s0 = inlined_call_operand.<no memory space> [shape: f32[1,1], index: 0, kind: input, shape index: {}]
  %s1 = inlined_call_operand.vmem [shape: f32[2,4,256], index: 1, kind: input, shape index: {}]
  %s2 = inlined_call_operand.vmem [shape: f32[2,4,1], index: 2, kind: input, shape index: {}]
  %s3 = inlined_call_operand.vmem [shape: f32[2,4,1], index: 3, kind: input, shape index: {}]
  %s4 = inlined_call_operand.hbm [shape: f32[2,4,256], index: 4, kind: output, shape index: {}]
  %s5 = sld [smem:[#allocation0]]
  $region49: #{tpu_custom_call.1} parent=0
    _
  %s7 = ssub.s32 1, %s5
  %s8 = scalar_select 0, %s7, %s5
  %9 = sst [smem:[#allocation2]] %s0
  $region1: #{tpu_custom_call.1} parent=0
    #allocation3 [shape = 'u8[8192]{0}', space=vmem, size = 0x2000, scoped, tag = 'output window, operand 0']
    #allocation4 [shape = 's32[2]{0}', space=sflag, size = 0x8, scoped, tag = 'scoped memory for tpu_custom_call.1']
    %10 = vsyncpa [#allocation4], 0
    %s11 = scalar_lea.sflag [#allocation4], 1
    %12 = vsyncpa %s11, 0
    loop: start=0, step=1, limit=4
    $region2: #{tpu_custom_call.1} parent=1 // loop_pre_header
      _
    $region3: #{tpu_custom_call.1} parent=1 // loop_header
      %s14 = sphi 0, %s18
      %p15 = scmp.ge.s32.totalorder %s14, 4
      %s22 = sphi 0, %s22
      %s24 = sphi 0, %s22
      %s25 = sphi 0, %s24
      %s39 = sphi 0, %s25
      %s45 = sphi 0, %s47
      %s48 = sphi 0, %s45
      %s49 = sphi 0, %s48
      %s65 = sphi 0, %s49
      %s71 = sphi 0, %s73
      %s74 = sphi 0, %s71
      %s75 = sphi 0, %s74
      %s91 = sphi 0, %s75
      %s97 = sphi 0, %s99
      %s100 = sphi 0, %s97
      %s101 = sphi 0, %s100
      %s117 = sphi 0, %s101
      %s123 = sphi 0, %s125
      %s126 = sphi 0, %s123
      %s127 = sphi 0, %s126
      %s143 = sphi 0, %s127
    $region4: #{tpu_custom_call.1} parent=1 // loop_header_branch
      %17 = sbr.rel (%p15) target = $region8
    $region5: #{tpu_custom_call.1} parent=1 // loop_body
      %s19 = ssub.s32 %s14, 1
      %s20 = ssub.s32 %s14, 2
      %s21 = sadd.s32 %s14, 1
      %s23 = sadd.s32 %s22, 1
      %p26 = scmp.eq.s32.totalorder %s14, 1
      %p27 = scmp.ne.s32.totalorder %s22, %s24
      %p28 = scmp.eq.s32.totalorder %s14, 0
      %p29 = por %p27, %p28
      %p30 = scmp.ne.s32.totalorder %s22, %s24
      %p31 = scmp.eq.s32.totalorder %s19, 1
      %p32 = por %p30, %p31
      %p33 = scmp.ne.s32.totalorder %s24, %s25
      %p34 = scmp.eq.s32.totalorder %s19, 0
      %p35 = por %p33, %p34
      %p36 = scmp.ne.s32.totalorder %s24, %s25
      %p37 = scmp.eq.s32.totalorder %s20, 1
      %p38 = por %p36, %p37
      %p40 = scmp.ne.s32.totalorder %s25, %s39
      %p41 = scmp.eq.s32.totalorder %s20, 0
      %p42 = por %p40, %p41
      %s43 = ssub.s32 %s14, %s21
      %p44 = scmp.eq.s32.totalorder %s43, 0
      %s46 = sadd.s32 %s45, 1
      %s47 = scalar_select %p44, %s45, %s46
      %p50 = pneg %p44
      %p51 = scmp.eq.s32.totalorder %s14, 1
      %p52 = por %p50, %p51
      %p53 = scmp.ne.s32.totalorder %s45, %s48
      %p54 = scmp.eq.s32.totalorder %s14, 0
      %p55 = por %p53, %p54
      %p56 = scmp.ne.s32.totalorder %s45, %s48
      %p57 = scmp.eq.s32.totalorder %s19, 1
      %p58 = por %p56, %p57
      %p59 = scmp.ne.s32.totalorder %s48, %s49
      %p60 = scmp.eq.s32.totalorder %s19, 0
      %p61 = por %p59, %p60
      %p62 = scmp.ne.s32.totalorder %s48, %s49
      %p63 = scmp.eq.s32.totalorder %s20, 1
      %p64 = por %p62, %p63
      %p66 = scmp.ne.s32.totalorder %s49, %s65
      %p67 = scmp.eq.s32.totalorder %s20, 0
      %p68 = por %p66, %p67
      %s69 = ssub.s32 %s14, %s21
      %p70 = scmp.eq.s32.totalorder %s69, 0
      %s72 = sadd.s32 %s71, 1
      %s73 = scalar_select %p70, %s71, %s72
      %p76 = pneg %p70
      %p77 = scmp.eq.s32.totalorder %s14, 1
      %p78 = por %p76, %p77
      %p79 = scmp.ne.s32.totalorder %s71, %s74
      %p80 = scmp.eq.s32.totalorder %s14, 0
      %p81 = por %p79, %p80
      %p82 = scmp.ne.s32.totalorder %s71, %s74
      %p83 = scmp.eq.s32.totalorder %s19, 1
      %p84 = por %p82, %p83
      %p85 = scmp.ne.s32.totalorder %s74, %s75
      %p86 = scmp.eq.s32.totalorder %s19, 0
      %p87 = por %p85, %p86
      %p88 = scmp.ne.s32.totalorder %s74, %s75
      %p89 = scmp.eq.s32.totalorder %s20, 1
      %p90 = por %p88, %p89
      %p92 = scmp.ne.s32.totalorder %s75, %s91
      %p93 = scmp.eq.s32.totalorder %s20, 0
      %p94 = por %p92, %p93
      %s95 = ssub.s32 %s14, %s21
      %p96 = scmp.eq.s32.totalorder %s95, 0
      %s98 = sadd.s32 %s97, 1
      %s99 = scalar_select %p96, %s97, %s98
      %p102 = pneg %p96
      %p103 = scmp.eq.s32.totalorder %s14, 1
      %p104 = por %p102, %p103
      %p105 = scmp.ne.s32.totalorder %s97, %s100
      %p106 = scmp.eq.s32.totalorder %s14, 0
      %p107 = por %p105, %p106
      %p108 = scmp.ne.s32.totalorder %s97, %s100
      %p109 = scmp.eq.s32.totalorder %s19, 1
      %p110 = por %p108, %p109
      %p111 = scmp.ne.s32.totalorder %s100, %s101
      %p112 = scmp.eq.s32.totalorder %s19, 0
      %p113 = por %p111, %p112
      %p114 = scmp.ne.s32.totalorder %s100, %s101
      %p115 = scmp.eq.s32.totalorder %s20, 1
      %p116 = por %p114, %p115
      %p118 = scmp.ne.s32.totalorder %s101, %s117
      %p119 = scmp.eq.s32.totalorder %s20, 0
      %p120 = por %p118, %p119
      %s121 = ssub.s32 %s14, %s21
      %p122 = scmp.eq.s32.totalorder %s121, 0
      %s124 = sadd.s32 %s123, 1
      %s125 = scalar_select %p122, %s123, %s124
      %p128 = pneg %p122
      %p129 = scmp.eq.s32.totalorder %s14, 1
      %p130 = por %p128, %p129
      %p131 = scmp.ne.s32.totalorder %s123, %s126
      %p132 = scmp.eq.s32.totalorder %s14, 0
      %p133 = por %p131, %p132
      %p134 = scmp.ne.s32.totalorder %s123, %s126
      %p135 = scmp.eq.s32.totalorder %s19, 1
      %p136 = por %p134, %p135
      %p137 = scmp.ne.s32.totalorder %s126, %s127
      %p138 = scmp.eq.s32.totalorder %s19, 0
      %p139 = por %p137, %p138
      %p140 = scmp.ne.s32.totalorder %s126, %s127
      %p141 = scmp.eq.s32.totalorder %s20, 1
      %p142 = por %p140, %p141
      %p144 = scmp.ne.s32.totalorder %s127, %s143
      %p145 = scmp.eq.s32.totalorder %s20, 0
      %p146 = por %p144, %p145
      %p147 = scmp.le.s32.totalorder 1, %s14
      %p148 = scmp.lt.s32.totalorder %s14, 3
      %p149 = pnand %p147, %p148
      %p150 = pneg %p149
      // Predicated region
      $region9: #{tpu_custom_call.1} parent=5 // pred_check
        _
      $region10: #{tpu_custom_call.1} parent=5 // pred_check_branch
        %152 = sbr.rel (%p149) target = $region12
      $region11: #{tpu_custom_call.1} parent=5 // pred_region
        %s153 = ssub.s32 %s14, 1
        // Predicated region
        $region13: #{tpu_custom_call.1} parent=11 // pred_check
          %p154 = pneg %p35
        $region14: #{tpu_custom_call.1} parent=11 // pred_check_branch
          %156 = sbr.rel (%p154) target = $region16
        $region15: #{tpu_custom_call.1} parent=11 // pred_region
          _
        $region16: #{tpu_custom_call.1} parent=11 // pred_fallthru
          _
      $region12: #{tpu_custom_call.1} parent=5 // pred_fallthru
        _
      %p157 = scmp.lt.s32.totalorder %s14, 2
      // Predicated region
      $region17: #{tpu_custom_call.1} parent=5 // pred_check
        %p158 = pneg %p157
      $region18: #{tpu_custom_call.1} parent=5 // pred_check_branch
        %160 = sbr.rel (%p158) target = $region20
      $region19: #{tpu_custom_call.1} parent=5 // pred_region
        // Predicated region
        $region21: #{tpu_custom_call.1} parent=19 // pred_check
          %p161 = pneg %p55
        $region22: #{tpu_custom_call.1} parent=19 // pred_check_branch
          %163 = sbr.rel (%p161) target = $region24
        $region23: #{tpu_custom_call.1} parent=19 // pred_region
          %p164 = scmp.lt.s32.totalorder %s14, 1
          %s165 = scalar_select %p164, %s14, 1
          %s166 = smul.addr %s165, 2
          %s167 = smul.addr %s166, 4
          %s168 = scalar_lea.vmem %s1, %s167
        $region24: #{tpu_custom_call.1} parent=19 // pred_fallthru
          _
        // Predicated region
        $region25: #{tpu_custom_call.1} parent=19 // pred_check
          %p169 = pneg %p81
        $region26: #{tpu_custom_call.1} parent=19 // pred_check_branch
          %171 = sbr.rel (%p169) target = $region28
        $region27: #{tpu_custom_call.1} parent=19 // pred_region
          %p172 = scmp.lt.s32.totalorder %s14, 1
          %s173 = scalar_select %p172, %s14, 1
          %s174 = smul.addr %s173, 4
          %s175 = scalar_lea.vmem %s2, %s174
        $region28: #{tpu_custom_call.1} parent=19 // pred_fallthru
          _
        // Predicated region
        $region29: #{tpu_custom_call.1} parent=19 // pred_check
          %p176 = pneg %p107
        $region30: #{tpu_custom_call.1} parent=19 // pred_check_branch
          %178 = sbr.rel (%p176) target = $region32
        $region31: #{tpu_custom_call.1} parent=19 // pred_region
          %p179 = scmp.lt.s32.totalorder %s14, 1
          %s180 = scalar_select %p179, %s14, 1
          %s181 = smul.addr %s180, 4
          %s182 = scalar_lea.vmem %s3, %s181
        $region32: #{tpu_custom_call.1} parent=19 // pred_fallthru
          _
      $region20: #{tpu_custom_call.1} parent=5 // pred_fallthru
        _
      %p183 = scmp.le.s32.totalorder 1, %s14
      %p184 = scmp.lt.s32.totalorder %s14, 3
      %p185 = pnand %p183, %p184
      %p186 = pneg %p185
      // Predicated region
      $region33: #{tpu_custom_call.1} parent=5 // pred_check
        _
      $region34: #{tpu_custom_call.1} parent=5 // pred_check_branch
        %188 = sbr.rel (%p185) target = $region36
      $region35: #{tpu_custom_call.1} parent=5 // pred_region
        %s189 = ssub.s32 %s14, 1
        %p190 = pneg %p35
        %p191 = pneg %p32
        %p192 = scmp.lt.s32.totalorder %s19, 1
        %s193 = scalar_select %p192, %s19, 1
        %s194 = smul.addr %s193, 2
        %s195 = smul.addr %s194, 4
        %s196 = scalar_lea.vmem %s1, %s195
        %p197 = pneg %p61
        %p198 = pneg %p58
        %p199 = scmp.lt.s32.totalorder %s19, 1
        %s200 = scalar_select %p199, %s19, 1
        %s201 = smul.addr %s200, 4
        %s202 = scalar_lea.vmem %s2, %s201
        %p203 = pneg %p87
        %p204 = pneg %p84
        %p205 = scmp.lt.s32.totalorder %s19, 1
        %s206 = scalar_select %p205, %s19, 1
        %s207 = smul.addr %s206, 4
        %s208 = scalar_lea.vmem %s3, %s207
        %p209 = pneg %p113
        %p210 = pneg %p110
        %p211 = pneg %p139
        %p212 = pneg %p136
        %s213 = sand.u32 %s126, 1
        %s214 = scalar_lea.sflag [#allocation4], %s213
        %s215 = sand.u32 %s126, 1
        %s216 = smul.addr %s215, 8
        %s217 = scalar_lea.vmem [#allocation3], %s216
        %p218 = scmp.lt.s32.totalorder %s19, 1
        %s219 = scalar_select %p218, %s19, 1
        %s220 = smul.addr %s219, 2
        %s221 = smul.addr %s220, 4
        %s222 = scalar_lea.vmem %s1, %s221
        %p223 = scmp.lt.s32.totalorder %s19, 1
        %s224 = scalar_select %p223, %s19, 1
        %s225 = smul.addr %s224, 4
        %s226 = scalar_lea.vmem %s2, %s225
        %p227 = scmp.lt.s32.totalorder %s19, 1
        %s228 = scalar_select %p227, %s19, 1
        %s229 = smul.addr %s228, 4
        %s230 = scalar_lea.vmem %s3, %s229
        %v231 = vld [vmem:[%s222] sm:$0xff]
        %s232 = sld [smem:[#allocation2]]
        %v234 = vcombine.high %v231, %v231
        %vm236 = vcmask 1043456
        %v237 = vsel %vm236, %v231, 0.0
        %v238 = vsel %vm236, %v234, 0.0
        %v239 = vadd.f32 %v237, %v238
        %240 = vadd.xlane.f32.xlu0 %v239
        %v241 = vpop.xlane.xlu0 %240
        %v242 = vmul.f32 %v231, %v231
        %v244 = vcombine.high %v242, %v242
        %v246 = vsel %vm236, %v242, 0.0
        %v247 = vsel %vm236, %v244, 0.0
        %v248 = vadd.f32 %v246, %v247
        %249 = vadd.xlane.f32.xlu0 %v248
        %v250 = vpop.xlane.xlu0 %249
        %v251 = vrcp.pop 256.0
        %v252 = vmul.f32 %v241, %v251
        %v253 = vmul.f32 %v241, %v252
        %v254 = vsub.f32 %v250, %v253
        %v255 = vmax.f32 %v254, 0.0
        %v256 = vrcp.pop 255.0
        %v257 = vmul.f32 %v255, %v256
        %v258 = vadd.f32 %v257, 1e-06
        %v259 = vrsqrt.pop %v258
        %v260 = vsel %vm236, %v241, 0.0
        %v261 = vrot.slane %v260, 4
        %v262 = vadd.f32 %v260, %v261
        %v263 = vrot.slane %v262, 2
        %v264 = vadd.f32 %v262, %v263
        %v265 = vrot.slane %v264, 1
        %v266 = vadd.f32 %v264, %v265
        %v267 = vsel %vm236, %v250, 0.0
        %v268 = vrot.slane %v267, 4
        %v269 = vadd.f32 %v267, %v268
        %v270 = vrot.slane %v269, 2
        %v271 = vadd.f32 %v269, %v270
        %v272 = vrot.slane %v271, 1
        %v273 = vadd.f32 %v271, %v272
        %v274 = vrcp.pop 1024.0
        %v275 = vmul.f32 %v266, %v274
        %v276 = vmul.f32 %v266, %v275
        %v277 = vsub.f32 %v273, %v276
        %v278 = vmax.f32 %v277, 0.0
        %v279 = vrcp.pop 1023.0
        %v280 = vmul.f32 %v278, %v279
        %v281 = vadd.f32 %v280, 1e-06
        %v282 = vrsqrt.pop %v281
        %v283 = vld [vmem:[%s226] sm:$0xf]
        %v284 = vld [vmem:[%s230] sm:$0xf]
        %v285 = vstv %s232
        %v286 = vmul.f32 %v285, %v259
        %s287 = ssub.f32 1.0, %s232
        %v288 = vstv %s287
        %v289 = vmul.f32 %v288, %v282
        %v290 = vadd.f32 %v286, %v289
        %v291 = vmul.f32 %v285, %v252
        %v292 = vmul.f32 %v291, %v259
        %v293 = vmul.f32 %v288, %v275
        %v294 = vmul.f32 %v293, %v282
        %v295 = vadd.f32 %v292, %v294
        %v296 = vmul.f32 %v283, %v290
        %v297 = vmul.f32 %v283, %v295
        %v298 = vsub.f32 %v284, %v297
        %300 = vset.pattern.permute.xlu0 0
        %301 = vperm.xlu0 %300, %v296
        %v302 = vpop.permute.xlu0 %301
        %v304 = vunpack.c.l.s4 839922192
        %v305 = vunpack.c.0.s8 %v304
        %v306 = vlaneseq
        %v307 = vshrl.u32 %v306, 7
        %v308 = vsub.s32 %v305, %v307
        %v309 = vrot.slane %v302, %v308
        %v311 = vmul.f32 %v231, %v309
        %313 = vset.pattern.permute.xlu0 0
        %314 = vperm.xlu0 %313, %v298
        %v315 = vpop.permute.xlu0 %314
        %v317 = vunpack.c.l.s4 839922192
        %v318 = vunpack.c.0.s8 %v317
        %v319 = vlaneseq
        %v320 = vshrl.u32 %v319, 7
        %v321 = vsub.s32 %v318, %v320
        %v322 = vrot.slane %v315, %v321
        %v324 = vadd.f32 %v311, %v322
        %325 = vst [vmem:[%s217] sm:$0xff] %v324
        %s326 = sand.u32 %s126, 1
        %s327 = scalar_lea.sflag [#allocation4], %s326
        %s328 = sand.u32 %s126, 1
        %s329 = smul.addr %s328, 8
        %s330 = scalar_lea.vmem [#allocation3], %s329
        // Predicated region
        $region37: #{tpu_custom_call.1} parent=35 // pred_check
          %p331 = pneg %p136
        $region38: #{tpu_custom_call.1} parent=35 // pred_check_branch
          %333 = sbr.rel (%p331) target = $region40
        $region39: #{tpu_custom_call.1} parent=35 // pred_region
          %s335 = ssub.s32 128, 128
          %336 = vsyncadd %s327, %s335
          %s337 = smul.addr %s19, 2
          %s338 = smul.addr %s337, 64
          %s339 = scalar_lea.hbm %s4, %s338
          %s341 = sshll.u32 %s330, 4
          %s342 = int_to_ptr.vmem [resolvable:$true] %s341
          %344 = dma.vmem_to_hbm [thread:$0]  %s342, 128, %s339, %s327
        $region40: #{tpu_custom_call.1} parent=35 // pred_fallthru
          _
      $region36: #{tpu_custom_call.1} parent=5 // pred_fallthru
        _
      %p345 = scmp.le.s32.totalorder 2, %s14
      // Predicated region
      $region41: #{tpu_custom_call.1} parent=5 // pred_check
        %p346 = pneg %p345
      $region42: #{tpu_custom_call.1} parent=5 // pred_check_branch
        %348 = sbr.rel (%p346) target = $region44
      $region43: #{tpu_custom_call.1} parent=5 // pred_region
        %s349 = ssub.s32 %s14, 2
        // Predicated region
        $region45: #{tpu_custom_call.1} parent=43 // pred_check
          %p350 = pneg %p142
        $region46: #{tpu_custom_call.1} parent=43 // pred_check_branch
          %352 = sbr.rel (%p350) target = $region48
        $region47: #{tpu_custom_call.1} parent=43 // pred_region
          %s353 = sand.u32 %s127, 1
          %s354 = scalar_lea.sflag [#allocation4], %s353
          %s355 = sand.u32 %s127, 1
          %s356 = smul.addr %s355, 8
          %s357 = scalar_lea.vmem [#allocation3], %s356
          %358 = dma.done %s354, 128
        $region48: #{tpu_custom_call.1} parent=43 // pred_fallthru
          _
      $region44: #{tpu_custom_call.1} parent=5 // pred_fallthru
        _
    $region6: #{tpu_custom_call.1} parent=1 // loop_footer
      %s18 = sadd.s32 1, %s14
    $region7: #{tpu_custom_call.1} parent=1 // loop_footer_branch
      %13 = sbr.rel target = $region3
    $region8: #{tpu_custom_call.1} parent=1 // loop_exit
      _
    %359 = vsyncpa [#allocation4], 1
    %s360 = scalar_lea.sflag [#allocation4], 1
    %361 = vsyncpa %s360, 1

</llo_original>
